<compile_context>
chip_gen: v7x
topology: tpu7x:2x2x1
jax: 0.10.0
libtpu: 0.0.40
codegen_flags: <defaults>
</compile_context>

<pallas_src>
import functools

import jax
import jax.numpy as jnp
from jax import lax
from jax.experimental import pallas as pl
from jax.experimental.pallas import tpu as pltpu

MARGIN = 0.5
COS_EPS = 1e-8      # F.cosine_similarity default eps
CLAMP_MIN = 1e-6    # .clamp(min=1e-06)


def _masked_seq_sum(ref, k, block_seq, seq_len):
    """Partial sum over the sequence axis of one (bb, bs, H) block, f32 accumulation."""
    x = ref[...]
    if seq_len % block_seq:
        # Ragged last sequence block: zero out rows past the true sequence end
        # so padded data never reaches the accumulator.
        seq_idx = lax.broadcasted_iota(jnp.int32, x.shape, 1) + k * block_seq
        x = jnp.where(seq_idx < seq_len, x, jnp.zeros((), x.dtype))
    return jnp.sum(x, axis=1, dtype=jnp.float32)


def _cosine_train_header_kernel(text_ref, pos_ref, neg_ref, hinge_ref,
                                t_acc, p_acc, n_acc, *, seq_len, block_seq):
    k = pl.program_id(1)  # sequence (reduction) axis

    @pl.when(k == 0)
    def _init():
        t_acc[...] = jnp.zeros_like(t_acc)
        p_acc[...] = jnp.zeros_like(p_acc)
        n_acc[...] = jnp.zeros_like(n_acc)

    # Accumulate sequence-axis sums in f32 scratch (AvgPooler numerator).
    t_acc[...] += _masked_seq_sum(text_ref, k, block_seq, seq_len)
    p_acc[...] += _masked_seq_sum(pos_ref, k, block_seq, seq_len)
    n_acc[...] += _masked_seq_sum(neg_ref, k, block_seq, seq_len)

    @pl.when(k == pl.num_programs(1) - 1)
    def _finalize():
        inv_s = jnp.float32(1.0 / seq_len)     # divide by TRUE sequence length
        t = t_acc[...] * inv_s                 # [bb, H] pooled text
        p = p_acc[...] * inv_s                 # [bb, H] pooled pos code
        n = n_acc[...] * inv_s                 # [bb, H] pooled neg code

        # Fused lane reductions (XLU) for all dot products / squared norms.
        tt = jnp.sum(t * t, axis=-1, keepdims=True)
        pp = jnp.sum(p * p, axis=-1, keepdims=True)
        nn = jnp.sum(n * n, axis=-1, keepdims=True)
        tp = jnp.sum(t * p, axis=-1, keepdims=True)
        tn = jnp.sum(t * n, axis=-1, keepdims=True)

        # rsqrt(max(||x||^2, eps^2)) == 1 / max(||x||, eps)  (EUP path).
        eps_sq = jnp.float32(COS_EPS * COS_EPS)
        inv_t = lax.rsqrt(jnp.maximum(tt, eps_sq))
        inv_p = lax.rsqrt(jnp.maximum(pp, eps_sq))
        inv_n = lax.rsqrt(jnp.maximum(nn, eps_sq))

        anchor_sim = tp * (inv_t * inv_p)      # cos(text, pos)   [bb, 1]
        neg_sim = tn * (inv_t * inv_n)         # cos(text, neg)   [bb, 1]

        hinge = jnp.maximum(MARGIN - anchor_sim + neg_sim, CLAMP_MIN)
        hinge_ref[...] = hinge.astype(hinge_ref.dtype)


def cosine_train_header(text_hidden, pos_code_hidden, neg_code_hidden,
                        *, target_tile_bytes=2 * 1024 * 1024):
    """Pallas implementation of CosineTrainHeader.forward. Returns scalar f32 loss."""
    assert text_hidden.shape == pos_code_hidden.shape == neg_code_hidden.shape
    B, S, H = text_hidden.shape
    itemsize = jnp.dtype(text_hidden.dtype).itemsize

    # Batch tile: full B if small (block == full dim is always legal),
    # otherwise a multiple of 8 sublane rows.
    if B <= 8:
        bb = B
    else:
        bb = min(64, (B // 8) * 8)

    # Sequence tile: full S if small; else a multiple of 8 sized so that one
    # input tile is <= target_tile_bytes.  3 inputs x 2 pipeline buffers then
    # stay well inside v5e's 16 MiB scoped-VMEM default and v7x's 64 MiB
    # physical VMEM, keeping double buffering (DMA/compute overlap) alive.
    if S <= 8:
        bs = S
    else:
        bs_cap = max(8, target_tile_bytes // (bb * H * itemsize))
        bs = max(8, min((S // 8) * 8, (bs_cap // 8) * 8))

    grid = (pl.cdiv(B, bb), pl.cdiv(S, bs))

    hinge = pl.pallas_call(
        functools.partial(_cosine_train_header_kernel, seq_len=S, block_seq=bs),
        out_shape=jax.ShapeDtypeStruct((B, 1), jnp.float32),
        grid_spec=pltpu.PrefetchScalarGridSpec(
            num_scalar_prefetch=0,
            grid=grid,
            in_specs=[
                pl.BlockSpec((bb, bs, H), lambda i, k: (i, k, 0)),
                pl.BlockSpec((bb, bs, H), lambda i, k: (i, k, 0)),
                pl.BlockSpec((bb, bs, H), lambda i, k: (i, k, 0)),
            ],
            # Output block index is constant along k -> resident accumulator,
            # written back to HBM only once per batch block.
            out_specs=pl.BlockSpec((bb, 1), lambda i, k: (i, 0)),
            scratch_shapes=[pltpu.VMEM((bb, H), jnp.float32)] * 3,
        ),
        compiler_params=pltpu.CompilerParams(
            dimension_semantics=("parallel", "arbitrary")),
    )(text_hidden, pos_code_hidden, neg_code_hidden)

    # Tiny final reduction over B per-row hinge values (kept outside the
    # kernel so the batch grid axis can stay "parallel" on v7x's 2 cores).
    return jnp.mean(hinge)


def _reference(text_hidden, pos_code_hidden, neg_code_hidden):
    # Pure-JAX reference of the PyTorch forward, for a sanity check.
    def pool(x):
        return jnp.mean(x.astype(jnp.float32), axis=1)

    def cos(a, b):
        an = jnp.maximum(jnp.linalg.norm(a, axis=-1), COS_EPS)
        bn = jnp.maximum(jnp.linalg.norm(b, axis=-1), COS_EPS)
        return jnp.sum(a * b, axis=-1) / (an * bn)

    t, p, n = pool(text_hidden), pool(pos_code_hidden), pool(neg_code_hidden)
    return jnp.mean(jnp.maximum(MARGIN - cos(t, p) + cos(t, n), CLAMP_MIN))


if __name__ == "__main__":
    B, S, H = 2, 8, 32   # batch, sequence, hidden_size (config.hidden_size = 32)
    key = jax.random.PRNGKey(0)
    k1, k2, k3 = jax.random.split(key, 3)
    text_hidden = jax.random.normal(k1, (B, S, H), dtype=jnp.float32)
    pos_code_hidden = jax.random.normal(k2, (B, S, H), dtype=jnp.float32)
    neg_code_hidden = jax.random.normal(k3, (B, S, H), dtype=jnp.float32)

    loss = cosine_train_header(text_hidden, pos_code_hidden, neg_code_hidden)
    loss = jax.block_until_ready(loss)

    ref = jax.block_until_ready(
        _reference(text_hidden, pos_code_hidden, neg_code_hidden))
    assert jnp.allclose(loss, ref, atol=1e-5, rtol=1e-5), (loss, ref)

    print("KERNEL_OK")
</pallas_src>

<mosaic_0001>
module attributes {stable_mosaic.version = 11 : i64} {
  func.func @_cosine_train_header_kernel(%arg0: i32, %arg1: i32, %arg2: memref<2x8x32xf32, #tpu.memory_space<vmem>>, %arg3: memref<2x8x32xf32, #tpu.memory_space<vmem>>, %arg4: memref<2x8x32xf32, #tpu.memory_space<vmem>>, %arg5: memref<2x1xf32, #tpu.memory_space<vmem>>, %arg6: memref<2x32xf32, #tpu.memory_space<vmem>>, %arg7: memref<2x32xf32, #tpu.memory_space<vmem>>, %arg8: memref<2x32xf32, #tpu.memory_space<vmem>>) attributes {dimension_semantics = [#tpu.dimension_semantics<parallel>, #tpu.dimension_semantics<arbitrary>], iteration_bounds = array<i64: 1, 1>, scalar_prefetch = 0 : i64, scratch_operands = 3 : i64, tpu.core_type = #tpu.core_type<tc>, window_params = [{transform_indices = @transform_0, window_bounds = array<i64: 2, 8, 32>}, {transform_indices = @transform_1, window_bounds = array<i64: 2, 8, 32>}, {transform_indices = @transform_2, window_bounds = array<i64: 2, 8, 32>}, {transform_indices = @transform_3, window_bounds = array<i64: 2, 1>}]} {
    %c0_i32 = arith.constant 0 : i32
    %0 = arith.cmpi eq, %arg1, %c0_i32 : i32
    %1 = arith.extui %0 : i1 to i32
    %c0_i32_0 = arith.constant 0 : i32
    %2 = arith.cmpi ne, %1, %c0_i32_0 : i32
    scf.if %2 {
      %cst_25 = arith.constant 0.000000e+00 : f32
      %21 = vector.broadcast %cst_25 : f32 to vector<2x32xf32>
      %c0_26 = arith.constant 0 : index
      %c0_27 = arith.constant 0 : index
      %22 = vector.load %arg6[%c0_26, %c0_27] : memref<2x32xf32, #tpu.memory_space<vmem>>, vector<2x32xf32>
      tpu.vector_store %arg6[%c0_26, %c0_27], %21 {strides = array<i32>} : memref<2x32xf32, #tpu.memory_space<vmem>>, vector<2x32xf32>,
      %cst_28 = arith.constant 0.000000e+00 : f32
      %23 = vector.broadcast %cst_28 : f32 to vector<2x32xf32>
      %c0_29 = arith.constant 0 : index
      %c0_30 = arith.constant 0 : index
      %24 = vector.load %arg7[%c0_29, %c0_30] : memref<2x32xf32, #tpu.memory_space<vmem>>, vector<2x32xf32>
      tpu.vector_store %arg7[%c0_29, %c0_30], %23 {strides = array<i32>} : memref<2x32xf32, #tpu.memory_space<vmem>>, vector<2x32xf32>,
      %cst_31 = arith.constant 0.000000e+00 : f32
      %25 = vector.broadcast %cst_31 : f32 to vector<2x32xf32>
      %c0_32 = arith.constant 0 : index
      %c0_33 = arith.constant 0 : index
      %26 = vector.load %arg8[%c0_32, %c0_33] : memref<2x32xf32, #tpu.memory_space<vmem>>, vector<2x32xf32>
      tpu.vector_store %arg8[%c0_32, %c0_33], %25 {strides = array<i32>} : memref<2x32xf32, #tpu.memory_space<vmem>>, vector<2x32xf32>,
    } else {
    }
    %c0 = arith.constant 0 : index
    %c0_1 = arith.constant 0 : index
    %3 = vector.load %arg6[%c0, %c0_1] : memref<2x32xf32, #tpu.memory_space<vmem>>, vector<2x32xf32>
    %c0_2 = arith.constant 0 : index
    %c0_3 = arith.constant 0 : index
    %c0_4 = arith.constant 0 : index
    %4 = vector.load %arg2[%c0_2, %c0_3, %c0_4] : memref<2x8x32xf32, #tpu.memory_space<vmem>>, vector<2x8x32xf32>
    %cst = arith.constant dense<0.000000e+00> : vector<2x32xf32>
    %5 = vector.multi_reduction <add>, %4, %cst [1] : vector<2x8x32xf32> to vector<2x32xf32>
    %6 = arith.addf %3, %5 : vector<2x32xf32>
    %c0_5 = arith.constant 0 : index
    %c0_6 = arith.constant 0 : index
    %7 = vector.load %arg6[%c0_5, %c0_6] : memref<2x32xf32, #tpu.memory_space<vmem>>, vector<2x32xf32>
    tpu.vector_store %arg6[%c0_5, %c0_6], %6 {strides = array<i32>} : memref<2x32xf32, #tpu.memory_space<vmem>>, vector<2x32xf32>,
    %c0_7 = arith.constant 0 : index
    %c0_8 = arith.constant 0 : index
    %8 = vector.load %arg7[%c0_7, %c0_8] : memref<2x32xf32, #tpu.memory_space<vmem>>, vector<2x32xf32>
    %c0_9 = arith.constant 0 : index
    %c0_10 = arith.constant 0 : index
    %c0_11 = arith.constant 0 : index
    %9 = vector.load %arg3[%c0_9, %c0_10, %c0_11] : memref<2x8x32xf32, #tpu.memory_space<vmem>>, vector<2x8x32xf32>
    %cst_12 = arith.constant dense<0.000000e+00> : vector<2x32xf32>
    %10 = vector.multi_reduction <add>, %9, %cst_12 [1] : vector<2x8x32xf32> to vector<2x32xf32>
    %11 = arith.addf %8, %10 : vector<2x32xf32>
    %c0_13 = arith.constant 0 : index
    %c0_14 = arith.constant 0 : index
    %12 = vector.load %arg7[%c0_13, %c0_14] : memref<2x32xf32, #tpu.memory_space<vmem>>, vector<2x32xf32>
    tpu.vector_store %arg7[%c0_13, %c0_14], %11 {strides = array<i32>} : memref<2x32xf32, #tpu.memory_space<vmem>>, vector<2x32xf32>,
    %c0_15 = arith.constant 0 : index
    %c0_16 = arith.constant 0 : index
    %13 = vector.load %arg8[%c0_15, %c0_16] : memref<2x32xf32, #tpu.memory_space<vmem>>, vector<2x32xf32>
    %c0_17 = arith.constant 0 : index
    %c0_18 = arith.constant 0 : index
    %c0_19 = arith.constant 0 : index
    %14 = vector.load %arg4[%c0_17, %c0_18, %c0_19] : memref<2x8x32xf32, #tpu.memory_space<vmem>>, vector<2x8x32xf32>
    %cst_20 = arith.constant dense<0.000000e+00> : vector<2x32xf32>
    %15 = vector.multi_reduction <add>, %14, %cst_20 [1] : vector<2x8x32xf32> to vector<2x32xf32>
    %16 = arith.addf %13, %15 : vector<2x32xf32>
    %c0_21 = arith.constant 0 : index
    %c0_22 = arith.constant 0 : index
    %17 = vector.load %arg8[%c0_21, %c0_22] : memref<2x32xf32, #tpu.memory_space<vmem>>, vector<2x32xf32>
    tpu.vector_store %arg8[%c0_21, %c0_22], %16 {strides = array<i32>} : memref<2x32xf32, #tpu.memory_space<vmem>>, vector<2x32xf32>,
    %c0_i32_23 = arith.constant 0 : i32
    %18 = arith.cmpi eq, %arg1, %c0_i32_23 : i32
    %19 = arith.extui %18 : i1 to i32
    %c0_i32_24 = arith.constant 0 : i32
    %20 = arith.cmpi ne, %19, %c0_i32_24 : i32
    scf.if %20 {
      %c0_25 = arith.constant 0 : index
      %c0_26 = arith.constant 0 : index
      %21 = vector.load %arg6[%c0_25, %c0_26] : memref<2x32xf32, #tpu.memory_space<vmem>>, vector<2x32xf32>
      %cst_27 = arith.constant 1.250000e-01 : f32
      %22 = vector.broadcast %cst_27 : f32 to vector<2x32xf32>
      %23 = arith.mulf %21, %22 : vector<2x32xf32>
      %c0_28 = arith.constant 0 : index
      %c0_29 = arith.constant 0 : index
      %24 = vector.load %arg7[%c0_28, %c0_29] : memref<2x32xf32, #tpu.memory_space<vmem>>, vector<2x32xf32>
      %cst_30 = arith.constant 1.250000e-01 : f32
      %25 = vector.broadcast %cst_30 : f32 to vector<2x32xf32>
      %26 = arith.mulf %24, %25 : vector<2x32xf32>
      %c0_31 = arith.constant 0 : index
      %c0_32 = arith.constant 0 : index
      %27 = vector.load %arg8[%c0_31, %c0_32] : memref<2x32xf32, #tpu.memory_space<vmem>>, vector<2x32xf32>
      %cst_33 = arith.constant 1.250000e-01 : f32
      %28 = vector.broadcast %cst_33 : f32 to vector<2x32xf32>
      %29 = arith.mulf %27, %28 : vector<2x32xf32>
      %30 = arith.mulf %23, %23 : vector<2x32xf32>
      %cst_34 = arith.constant dense<0.000000e+00> : vector<2xf32>
      %31 = vector.multi_reduction <add>, %30, %cst_34 [1] : vector<2x32xf32> to vector<2xf32>
      %32 = vector.shape_cast %31 : vector<2xf32> to vector<2x1xf32>
      %33 = arith.mulf %26, %26 : vector<2x32xf32>
      %cst_35 = arith.constant dense<0.000000e+00> : vector<2xf32>
      %34 = vector.multi_reduction <add>, %33, %cst_35 [1] : vector<2x32xf32> to vector<2xf32>
      %35 = vector.shape_cast %34 : vector<2xf32> to vector<2x1xf32>
      %36 = arith.mulf %29, %29 : vector<2x32xf32>
      %cst_36 = arith.constant dense<0.000000e+00> : vector<2xf32>
      %37 = vector.multi_reduction <add>, %36, %cst_36 [1] : vector<2x32xf32> to vector<2xf32>
      %38 = vector.shape_cast %37 : vector<2xf32> to vector<2x1xf32>
      %39 = arith.mulf %23, %26 : vector<2x32xf32>
      %cst_37 = arith.constant dense<0.000000e+00> : vector<2xf32>
      %40 = vector.multi_reduction <add>, %39, %cst_37 [1] : vector<2x32xf32> to vector<2xf32>
      %41 = vector.shape_cast %40 : vector<2xf32> to vector<2x1xf32>
      %42 = arith.mulf %23, %29 : vector<2x32xf32>
      %cst_38 = arith.constant dense<0.000000e+00> : vector<2xf32>
      %43 = vector.multi_reduction <add>, %42, %cst_38 [1] : vector<2x32xf32> to vector<2xf32>
      %44 = vector.shape_cast %43 : vector<2xf32> to vector<2x1xf32>
      %cst_39 = arith.constant 1.000000e-16 : f32
      %45 = vector.broadcast %cst_39 : f32 to vector<2x1xf32>
      %46 = arith.maximumf %32, %45 : vector<2x1xf32>
      %47 = math.rsqrt %46 : vector<2x1xf32>
      %cst_40 = arith.constant 1.000000e-16 : f32
      %48 = vector.broadcast %cst_40 : f32 to vector<2x1xf32>
      %49 = arith.maximumf %35, %48 : vector<2x1xf32>
      %50 = math.rsqrt %49 : vector<2x1xf32>
      %cst_41 = arith.constant 1.000000e-16 : f32
      %51 = vector.broadcast %cst_41 : f32 to vector<2x1xf32>
      %52 = arith.maximumf %38, %51 : vector<2x1xf32>
      %53 = math.rsqrt %52 : vector<2x1xf32>
      %54 = arith.mulf %47, %50 : vector<2x1xf32>
      %55 = arith.mulf %41, %54 : vector<2x1xf32>
      %56 = arith.mulf %47, %53 : vector<2x1xf32>
      %57 = arith.mulf %44, %56 : vector<2x1xf32>
      %cst_42 = arith.constant 5.000000e-01 : f32
      %58 = vector.broadcast %cst_42 : f32 to vector<2x1xf32>
      %59 = arith.subf %58, %55 : vector<2x1xf32>
      %60 = arith.addf %59, %57 : vector<2x1xf32>
      %cst_43 = arith.constant 9.99999997E-7 : f32
      %61 = vector.broadcast %cst_43 : f32 to vector<2x1xf32>
      %62 = arith.maximumf %60, %61 : vector<2x1xf32>
      %c0_44 = arith.constant 0 : index
      %c0_45 = arith.constant 0 : index
      %63 = vector.load %arg5[%c0_44, %c0_45] : memref<2x1xf32, #tpu.memory_space<vmem>>, vector<2x1xf32>
      tpu.vector_store %arg5[%c0_44, %c0_45], %62 {strides = array<i32>} : memref<2x1xf32, #tpu.memory_space<vmem>>, vector<2x1xf32>,
    } else {
    }
    return
  }
  func.func @transform_0(%arg0: i32, %arg1: i32) -> (i32, i32, i32) {
    %c0_i32 = arith.constant 0 : i32
    %c0_i32_0 = arith.constant 0 : i32
    return %arg0, %arg1, %c0_i32 : i32, i32, i32
  }
  func.func @transform_1(%arg0: i32, %arg1: i32) -> (i32, i32, i32) {
    %c0_i32 = arith.constant 0 : i32
    %c0_i32_0 = arith.constant 0 : i32
    return %arg0, %arg1, %c0_i32 : i32, i32, i32
  }
  func.func @transform_2(%arg0: i32, %arg1: i32) -> (i32, i32, i32) {
    %c0_i32 = arith.constant 0 : i32
    %c0_i32_0 = arith.constant 0 : i32
    return %arg0, %arg1, %c0_i32 : i32, i32, i32
  }
  func.func @transform_3(%arg0: i32, %arg1: i32) -> (i32, i32) {
    %c0_i32 = arith.constant 0 : i32
    %c0_i32_0 = arith.constant 0 : i32
    return %arg0, %c0_i32 : i32, i32
  }
}

</mosaic_0001>

<llo_original>
// kernel: tpu_custom_call.1
$region0: #{tpu_custom_call.1}
  #allocation0 [shape = 'u32[]', space=smem, size = 0x4, offset = 0x4, fixed_abs, tag = 'smem constant byte address 0x4 - core index']
  #allocation1 [shape = 'u32[144,128]{1,0:T(1,128)}', space=vmem, size = 0x12000, scoped, tag = 'internal scratch']
  #allocation2 [shape = 'f32[2,32]{1,0:T(2,128)}', space=vmem, size = 0x400, scoped, tag = 'scratch operand']
  #allocation3 [shape = 'f32[2,32]{1,0:T(2,128)}', space=vmem, size = 0x400, scoped, tag = 'scratch operand']
  #allocation4 [shape = 'f32[2,32]{1,0:T(2,128)}', space=vmem, size = 0x400, scoped, tag = 'scratch operand']
  %s0 = inlined_call_operand.hbm [shape: f32[2,8,32], index: 0, kind: input, shape index: {}]
  %s1 = inlined_call_operand.hbm [shape: f32[2,8,32], index: 1, kind: input, shape index: {}]
  %s2 = inlined_call_operand.hbm [shape: f32[2,8,32], index: 2, kind: input, shape index: {}]
  %s3 = inlined_call_operand.vmem [shape: f32[2,1], index: 3, kind: output, shape index: {}]
  %s4 = sld [smem:[#allocation0]]
  $region42: #{tpu_custom_call.1} parent=0
    _
  %s6 = ssub.s32 1, %s4
  %s7 = scalar_select 0, %s6, %s4
  $region1: #{tpu_custom_call.1} parent=0
    #allocation5 [shape = 'u8[8192]{0}', space=vmem, size = 0x2000, scoped, tag = 'input window, operand 0, single buffered']
    #allocation6 [shape = 's32[1]{0}', space=sflag, size = 0x4, scoped, tag = 'scoped memory for tpu_custom_call.1']
    #allocation7 [shape = 'u8[8192]{0}', space=vmem, size = 0x2000, scoped, tag = 'input window, operand 1, single buffered']
    #allocation8 [shape = 's32[1]{0}', space=sflag, size = 0x4, scoped, tag = 'scoped memory for tpu_custom_call.1']
    #allocation9 [shape = 'u8[8192]{0}', space=vmem, size = 0x2000, scoped, tag = 'input window, operand 2, single buffered']
    %8 = vsyncpa [#allocation6], 0
    %9 = vsyncpa [#allocation8], 0
    // Predicated region
    $region2: #{tpu_custom_call.1} parent=1 // pred_check
      _
    $region3: #{tpu_custom_call.1} parent=1 // pred_check_branch
      %11 = sbr.rel (0) target = $region5
    $region4: #{tpu_custom_call.1} parent=1 // pred_region
      %s13 = ssub.s32 256, 256
      %14 = vsyncadd [#allocation6], %s13
      %s15 = sshll.u32 [#allocation5], 4
      %s16 = int_to_ptr.vmem [resolvable:$true] %s15
      %21 = dma.hbm_to_vmem [thread:$0]  %s0, 256, %s16, [#allocation6], 128, 128, 8
    $region5: #{tpu_custom_call.1} parent=1 // pred_fallthru
      _
    // Predicated region
    $region6: #{tpu_custom_call.1} parent=1 // pred_check
      _
    $region7: #{tpu_custom_call.1} parent=1 // pred_check_branch
      %23 = sbr.rel (0) target = $region9
    $region8: #{tpu_custom_call.1} parent=1 // pred_region
      %s25 = ssub.s32 256, 256
      %26 = vsyncadd [#allocation8], %s25
      %s27 = sshll.u32 [#allocation7], 4
      %s28 = int_to_ptr.vmem [resolvable:$true] %s27
      %33 = dma.hbm_to_vmem [thread:$0]  %s1, 256, %s28, [#allocation8], 128, 128, 8
    $region9: #{tpu_custom_call.1} parent=1 // pred_fallthru
      _
    // Predicated region
    $region10: #{tpu_custom_call.1} parent=1 // pred_check
      _
    $region11: #{tpu_custom_call.1} parent=1 // pred_check_branch
      %35 = sbr.rel (0) target = $region13
    $region12: #{tpu_custom_call.1} parent=1 // pred_region
      %s37 = ssub.s32 256, 256
      %38 = vsyncadd [#allocation8], %s37
      %s39 = sshll.u32 [#allocation9], 4
      %s40 = int_to_ptr.vmem [resolvable:$true] %s39
      %45 = dma.hbm_to_vmem [thread:$0]  %s2, 256, %s40, [#allocation8], 128, 128, 8
    $region13: #{tpu_custom_call.1} parent=1 // pred_fallthru
      _
    // Predicated region
    $region14: #{tpu_custom_call.1} parent=1 // pred_check
      _
    $region15: #{tpu_custom_call.1} parent=1 // pred_check_branch
      %47 = sbr.rel (0) target = $region17
    $region16: #{tpu_custom_call.1} parent=1 // pred_region
      %48 = dma.done [#allocation6], 256
    $region17: #{tpu_custom_call.1} parent=1 // pred_fallthru
      _
    // Predicated region
    $region18: #{tpu_custom_call.1} parent=1 // pred_check
      _
    $region19: #{tpu_custom_call.1} parent=1 // pred_check_branch
      %50 = sbr.rel (0) target = $region21
    $region20: #{tpu_custom_call.1} parent=1 // pred_region
      %51 = dma.done [#allocation8], 256
    $region21: #{tpu_custom_call.1} parent=1 // pred_fallthru
      _
    // Predicated region
    $region22: #{tpu_custom_call.1} parent=1 // pred_check
      _
    $region23: #{tpu_custom_call.1} parent=1 // pred_check_branch
      %53 = sbr.rel (0) target = $region25
    $region24: #{tpu_custom_call.1} parent=1 // pred_region
      %54 = dma.done [#allocation8], 256
    $region25: #{tpu_custom_call.1} parent=1 // pred_fallthru
      _
    %p55 = scmp.eq.s32.totalorder 0, 0
    // Predicated region
    $region26: #{tpu_custom_call.1} parent=1 // pred_check
      %p56 = pneg %p55
    $region27: #{tpu_custom_call.1} parent=1 // pred_check_branch
      %58 = sbr.rel (%p56) target = $region29
    $region28: #{tpu_custom_call.1} parent=1 // pred_region
      %vm59 = vcmask 254976
      %60 = vst.msk [vmem:[#allocation2] sm:$0x3] %vm59, 0.0
      %61 = vst.msk [vmem:[#allocation3] sm:$0x3] %vm59, 0.0
      %62 = vst.msk [vmem:[#allocation4] sm:$0x3] %vm59, 0.0
    $region29: #{tpu_custom_call.1} parent=1 // pred_fallthru
      _
    %v63 = vld [vmem:[#allocation2] sm:$0x3]
    %v64 = vld [vmem:[#allocation5] sm:$0xff]
    %v65 = vld [vmem:[#allocation5 + $0x8] sm:$0xff]
    %vm66 = vcmask 261120
    %v67 = vsel %vm66, %v64, 0.0
    %v68 = vrot.slane %v67, 4
    %v69 = vadd.f32 %v67, %v68
    %v70 = vrot.slane %v69, 2
    %v71 = vadd.f32 %v69, %v70
    %v72 = vrot.slane %v71, 1
    %v73 = vadd.f32 %v71, %v72
    %v74 = vsel %vm66, %v65, 0.0
    %v75 = vrot.slane %v74, 4
    %v76 = vadd.f32 %v74, %v75
    %v77 = vrot.slane %v76, 2
    %v78 = vadd.f32 %v76, %v77
    %v79 = vrot.slane %v78, 1
    %v80 = vadd.f32 %v78, %v79
    %vm83 = vcmask 1041409
    %v84 = vsel %vm83, %v80, %v73
    %v86 = vadd.f32 %v63, %v84
    %vm87 = vcmask 254976
    %88 = vst.msk [vmem:[#allocation2] sm:$0x3] %vm87, %v86
    %v89 = vld [vmem:[#allocation3] sm:$0x3]
    %v90 = vld [vmem:[#allocation7] sm:$0xff]
    %v91 = vld [vmem:[#allocation7 + $0x8] sm:$0xff]
    %v92 = vsel %vm66, %v90, 0.0
    %v93 = vrot.slane %v92, 4
    %v94 = vadd.f32 %v92, %v93
    %v95 = vrot.slane %v94, 2
    %v96 = vadd.f32 %v94, %v95
    %v97 = vrot.slane %v96, 1
    %v98 = vadd.f32 %v96, %v97
    %v99 = vsel %vm66, %v91, 0.0
    %v100 = vrot.slane %v99, 4
    %v101 = vadd.f32 %v99, %v100
    %v102 = vrot.slane %v101, 2
    %v103 = vadd.f32 %v101, %v102
    %v104 = vrot.slane %v103, 1
    %v105 = vadd.f32 %v103, %v104
    %v108 = vsel %vm83, %v105, %v98
    %v110 = vadd.f32 %v89, %v108
    %111 = vst.msk [vmem:[#allocation3] sm:$0x3] %vm87, %v110
    %v112 = vld [vmem:[#allocation4] sm:$0x3]
    %v113 = vld [vmem:[#allocation9] sm:$0xff]
    %v114 = vld [vmem:[#allocation9 + $0x8] sm:$0xff]
    %v115 = vsel %vm66, %v113, 0.0
    %v116 = vrot.slane %v115, 4
    %v117 = vadd.f32 %v115, %v116
    %v118 = vrot.slane %v117, 2
    %v119 = vadd.f32 %v117, %v118
    %v120 = vrot.slane %v119, 1
    %v121 = vadd.f32 %v119, %v120
    %v122 = vsel %vm66, %v114, 0.0
    %v123 = vrot.slane %v122, 4
    %v124 = vadd.f32 %v122, %v123
    %v125 = vrot.slane %v124, 2
    %v126 = vadd.f32 %v124, %v125
    %v127 = vrot.slane %v126, 1
    %v128 = vadd.f32 %v126, %v127
    %v131 = vsel %vm83, %v128, %v121
    %v133 = vadd.f32 %v112, %v131
    %134 = vst.msk [vmem:[#allocation4] sm:$0x3] %vm87, %v133
    // Predicated region
    $region30: #{tpu_custom_call.1} parent=1 // pred_check
      %p135 = pneg %p55
    $region31: #{tpu_custom_call.1} parent=1 // pred_check_branch
      %137 = sbr.rel (%p135) target = $region33
    $region32: #{tpu_custom_call.1} parent=1 // pred_region
      %v138 = vld [vmem:[#allocation2] sm:$0x3]
      %v139 = vmul.f32 %v138, 0.125
      %v140 = vld [vmem:[#allocation3] sm:$0x3]
      %v141 = vmul.f32 %v140, 0.125
      %v142 = vld [vmem:[#allocation4] sm:$0x3]
      %v143 = vmul.f32 %v142, 0.125
      %v144 = vmul.f32 %v139, %v139
      %v145 = vsel %vm87, %v144, 0.0
      %146 = vadd.xlane.f32.xlu0 %v145
      %v147 = vpop.xlane.xlu0 %146
      %v148 = vmul.f32 %v141, %v141
      %v149 = vsel %vm87, %v148, 0.0
      %150 = vadd.xlane.f32.xlu0 %v149
      %v151 = vpop.xlane.xlu0 %150
      %v152 = vmul.f32 %v143, %v143
      %v153 = vsel %vm87, %v152, 0.0
      %154 = vadd.xlane.f32.xlu0 %v153
      %v155 = vpop.xlane.xlu0 %154
      %v156 = vmul.f32 %v139, %v141
      %v157 = vsel %vm87, %v156, 0.0
      %158 = vadd.xlane.f32.xlu0 %v157
      %v159 = vpop.xlane.xlu0 %158
      %v160 = vmul.f32 %v139, %v143
      %v161 = vsel %vm87, %v160, 0.0
      %162 = vadd.xlane.f32.xlu0 %v161
      %v163 = vpop.xlane.xlu0 %162
      %v164 = vmax.f32 %v147, 1e-16
      %v165 = vrsqrt.pop %v164
      %v166 = vmax.f32 %v151, 1e-16
      %v167 = vrsqrt.pop %v166
      %v168 = vmax.f32 %v155, 1e-16
      %v169 = vrsqrt.pop %v168
      %v170 = vmul.f32 %v165, %v167
      %v171 = vmul.f32 %v159, %v170
      %v172 = vmul.f32 %v165, %v169
      %v173 = vmul.f32 %v163, %v172
      %v174 = vsub.f32 0.5, %v171
      %v175 = vadd.f32 %v174, %v173
      %v176 = vmax.f32 %v175, 1e-06
      %vm177 = vcmask 1024
      %178 = vst.msk [vmem:[%s3] sm:$0x3] %vm177, %v176
    $region33: #{tpu_custom_call.1} parent=1 // pred_fallthru
      _
    // Predicated region
    $region34: #{tpu_custom_call.1} parent=1 // pred_check
      _
    $region35: #{tpu_custom_call.1} parent=1 // pred_check_branch
      %180 = sbr.rel (0) target = $region37
    $region36: #{tpu_custom_call.1} parent=1 // pred_region
      _
    $region37: #{tpu_custom_call.1} parent=1 // pred_fallthru
      _
    // Predicated region
    $region38: #{tpu_custom_call.1} parent=1 // pred_check
      _
    $region39: #{tpu_custom_call.1} parent=1 // pred_check_branch
      %182 = sbr.rel (0) target = $region41
    $region40: #{tpu_custom_call.1} parent=1 // pred_region
      _
    $region41: #{tpu_custom_call.1} parent=1 // pred_fallthru
      _
    %183 = vsyncpa [#allocation6], 1
    %184 = vsyncpa [#allocation8], 1

</llo_original>
